<compile_context>
chip_gen: v7x
topology: tpu7x:2x2x1
jax: 0.10.0
libtpu: 0.0.40
codegen_flags: <defaults>
</compile_context>

<pallas_src>
import jax
import jax.numpy as jnp
from jax.experimental import pallas as pl
from jax.experimental.pallas import tpu as pltpu

_LANE = 128


def _round_up(n, m):
    return ((n + m - 1) // m) * m


def _make_kernel(lookup_plan, pcats):
    """Kernel: fused one-hot x block-diagonal matmul, one lane-dense store per tile."""

    def kernel(x_ref, rhs_ref, out_ref):
        tb = x_ref.shape[0]
        xv = x_ref[...]                                    # load x tile once ([tb, nvars] i32)
        iotas = {}                                         # reuse iota per padded cardinality
        parts = []
        for (_, col), pcat in zip(lookup_plan, pcats):
            if pcat not in iotas:
                iotas[pcat] = jax.lax.broadcasted_iota(jnp.int32, (tb, pcat), 1)
            idx = xv[:, col:col + 1]                       # [tb, 1] int32
            # 0/1 selector; padding lanes (>= cardinality) are always 0.
            parts.append((iotas[pcat] == idx).astype(jnp.float32))   # [tb, pcat]
        onehot = jnp.concatenate(parts, axis=1)            # [tb, k_total], lane-aligned blocks
        # Single MXU dot against the block-diagonal RHS -> one full-width unmasked store.
        out_ref[...] = jnp.dot(onehot, rhs_ref[...],
                               preferred_element_type=jnp.float32)

    return kernel


def concatenated_embeddings(x, tables, *, tb=128):
    """x: [batch, num_variables] int32; tables: list of [cardinality, emb] float32."""
    table_shapes = [tuple(t.shape) for t in tables]
    num_tables = len(tables)
    batch, nvars = x.shape
    assert nvars == num_tables + 1, "forward expects num_variables == num_tables + 1"

    # (table_index, input_column) pairs, matching the PyTorch forward exactly
    # (table 0 is used for both column 0 and column 1).
    lookup_plan = [(0, 0)] + [(i, i + 1) for i in range(num_tables)]
    out_dim = sum(table_shapes[t][1] for t, _ in lookup_plan)
    out_pad = _round_up(out_dim, _LANE)

    # Pad each lookup's cardinality to a lane multiple so the in-kernel one-hot
    # concat is lane-aligned (no masked shifts), and build the block-diagonal RHS:
    # lookup j's table sits at row block j and at its running embedding column offset.
    pcats = [_round_up(table_shapes[t][0], _LANE) for t, _ in lookup_plan]
    k_total = sum(pcats)
    rhs = jnp.zeros((k_total, out_pad), dtype=jnp.float32)
    r_off, c_off = 0, 0
    for (t_idx, _), pcat in zip(lookup_plan, pcats):
        cat, emb = table_shapes[t_idx]
        rhs = rhs.at[r_off:r_off + cat, c_off:c_off + emb].set(tables[t_idx])
        r_off += pcat
        c_off += emb

    # Batch tiling: pad rows to a multiple of tb (padding rows use index 0, always
    # valid) and slice them off afterwards, so no remainder rows are dropped.
    tb = min(tb, _round_up(batch, 8))
    batch_pad = _round_up(batch, tb)
    if batch_pad != batch:
        x = jnp.pad(x, ((0, batch_pad - batch), (0, 0)))
    grid = (batch_pad // tb,)

    kernel = _make_kernel(lookup_plan, pcats)

    bytes_accessed = (batch_pad * nvars * 4 + k_total * out_pad * 4
                      + batch_pad * out_pad * 4)
    out = pl.pallas_call(
        kernel,
        out_shape=jax.ShapeDtypeStruct((batch_pad, out_pad), jnp.float32),
        grid_spec=pltpu.PrefetchScalarGridSpec(
            num_scalar_prefetch=0,
            grid=grid,
            in_specs=[
                pl.BlockSpec((tb, nvars), lambda i: (i, 0)),          # batch tile of indices
                pl.BlockSpec((k_total, out_pad), lambda i: (0, 0)),   # resident fused RHS
            ],
            out_specs=pl.BlockSpec((tb, out_pad), lambda i: (i, 0)),
        ),
        compiler_params=pltpu.CompilerParams(
            dimension_semantics=("parallel",),        # batch tiles shard across v7x cores
            vmem_limit_bytes=32 * 1024 * 1024),
        cost_estimate=pl.CostEstimate(
            flops=2 * batch_pad * k_total * out_pad,
            transcendentals=0,
            bytes_accessed=bytes_accessed),
    )(x, rhs)
    # Slice off batch padding and the lane padding of the output.
    return out[:batch, :out_dim]


def _reference(x, tables):
    num_tables = len(tables)
    parts = [jnp.take(tables[0], x[:, 0], axis=0)]
    parts += [jnp.take(tables[i], x[:, i + 1], axis=0) for i in range(num_tables)]
    return jnp.concatenate(parts, axis=1)


if __name__ == "__main__":
    # embedding_table_shapes: {col_name: (cardinality, embedding_size)}
    embedding_table_shapes = {"a": (100, 16), "b": (50, 8), "c": (30, 8)}
    shapes = list(embedding_table_shapes.values())
    num_tables = len(shapes)
    num_variables = num_tables + 1
    batch = 200  # not a tile multiple -> exercises padding + a multi-step parallel grid

    key = jax.random.PRNGKey(0)
    keys = jax.random.split(key, num_tables + 1)

    # torch.nn.Embedding default init: weight ~ N(0, 1)
    tables = [jax.random.normal(keys[i], (cat, emb), dtype=jnp.float32)
              for i, (cat, emb) in enumerate(shapes)]

    # Per-column cardinality caps (cols 0 and 1 both index table 0; col j>=1 -> table j-1).
    col_max = [shapes[0][0]] + [shapes[i][0] for i in range(num_tables)]
    xkeys = jax.random.split(keys[-1], num_variables)
    cols = [jax.random.randint(xkeys[j], (batch, 1), 0, col_max[j], dtype=jnp.int32)
            for j in range(num_variables)]
    x = jnp.concatenate(cols, axis=1)  # [batch, num_variables] int32 (int64 in torch)

    out = jax.block_until_ready(concatenated_embeddings(x, tables))

    ref = _reference(x, tables)
    out_dim = shapes[0][1] + sum(e for _, e in shapes)
    assert out.shape == (batch, out_dim)
    assert jnp.allclose(out, ref, atol=1e-5, rtol=1e-5)
    print("KERNEL_OK")
</pallas_src>

<mosaic_0001>
module attributes {stable_mosaic.version = 11 : i64} {
  func.func @kernel(%arg0: i32, %arg1: memref<128x4xi32, #tpu.memory_space<vmem>>, %arg2: memref<512x128xf32, #tpu.memory_space<vmem>>, %arg3: memref<128x128xf32, #tpu.memory_space<vmem>>) attributes {dimension_semantics = [#tpu.dimension_semantics<parallel>], iteration_bounds = array<i64: 2>, scalar_prefetch = 0 : i64, scratch_operands = 0 : i64, tpu.core_type = #tpu.core_type<tc>, window_params = [{transform_indices = @transform_0, window_bounds = array<i64: 128, 4>}, {pipeline_mode = #tpu.pipeline_mode<synchronous>, transform_indices = @transform_1, window_bounds = array<i64: 512, 128>}, {transform_indices = @transform_2, window_bounds = array<i64: 128, 128>}]} {
    %c0 = arith.constant 0 : index
    %c0_0 = arith.constant 0 : index
    %0 = vector.load %arg1[%c0, %c0_0] : memref<128x4xi32, #tpu.memory_space<vmem>>, vector<128x4xi32>
    %1 = tpu.iota {dimensions = array<i32: 1>} : vector<128x128xi32>
    %2 = vector.extract_strided_slice %0 {offsets = [0, 0], sizes = [128, 1], strides = [1, 1]} : vector<128x4xi32> to vector<128x1xi32>
    %3 = vector.broadcast %2 : vector<128x1xi32> to vector<128x128xi32>
    %4 = arith.cmpi eq, %1, %3 : vector<128x128xi32>
    %5 = arith.extui %4 : vector<128x128xi1> to vector<128x128xi32>
    %6 = arith.sitofp %5 : vector<128x128xi32> to vector<128x128xf32>
    %7 = vector.extract_strided_slice %0 {offsets = [0, 1], sizes = [128, 1], strides = [1, 1]} : vector<128x4xi32> to vector<128x1xi32>
    %8 = vector.broadcast %7 : vector<128x1xi32> to vector<128x128xi32>
    %9 = arith.cmpi eq, %1, %8 : vector<128x128xi32>
    %10 = arith.extui %9 : vector<128x128xi1> to vector<128x128xi32>
    %11 = arith.sitofp %10 : vector<128x128xi32> to vector<128x128xf32>
    %12 = vector.extract_strided_slice %0 {offsets = [0, 2], sizes = [128, 1], strides = [1, 1]} : vector<128x4xi32> to vector<128x1xi32>
    %13 = vector.broadcast %12 : vector<128x1xi32> to vector<128x128xi32>
    %14 = arith.cmpi eq, %1, %13 : vector<128x128xi32>
    %15 = arith.extui %14 : vector<128x128xi1> to vector<128x128xi32>
    %16 = arith.sitofp %15 : vector<128x128xi32> to vector<128x128xf32>
    %17 = vector.extract_strided_slice %0 {offsets = [0, 3], sizes = [128, 1], strides = [1, 1]} : vector<128x4xi32> to vector<128x1xi32>
    %18 = vector.broadcast %17 : vector<128x1xi32> to vector<128x128xi32>
    %19 = arith.cmpi eq, %1, %18 : vector<128x128xi32>
    %20 = arith.extui %19 : vector<128x128xi1> to vector<128x128xi32>
    %21 = arith.sitofp %20 : vector<128x128xi32> to vector<128x128xf32>
    %22 = tpu.concatenate %6, %11, %16, %21 in 1 : vector<128x128xf32>, vector<128x128xf32>, vector<128x128xf32>, vector<128x128xf32> -> vector<128x512xf32>
    %c0_1 = arith.constant 0 : index
    %c0_2 = arith.constant 0 : index
    %23 = vector.load %arg2[%c0_1, %c0_2] : memref<512x128xf32, #tpu.memory_space<vmem>>, vector<512x128xf32>
    %cst = arith.constant dense<0.000000e+00> : vector<128x128xf32>
    %24 = tpu.matmul %22, %23, %cst {dimension_numbers = #tpu.dot_dimension_numbers<[1], [0], [0], [1], [0, 0, 1, 1], [], []>} : vector<128x512xf32>, vector<512x128xf32>, vector<128x128xf32> -> vector<128x128xf32>
    %c0_3 = arith.constant 0 : index
    %c0_4 = arith.constant 0 : index
    %25 = vector.load %arg3[%c0_3, %c0_4] : memref<128x128xf32, #tpu.memory_space<vmem>>, vector<128x128xf32>
    tpu.vector_store %arg3[%c0_3, %c0_4], %24 {strides = array<i32>} : memref<128x128xf32, #tpu.memory_space<vmem>>, vector<128x128xf32>,
    return
  }
  func.func @transform_0(%arg0: i32) -> (i32, i32) {
    %c0_i32 = arith.constant 0 : i32
    %c0_i32_0 = arith.constant 0 : i32
    return %arg0, %c0_i32 : i32, i32
  }
  func.func @transform_1(%arg0: i32) -> (i32, i32) {
    %c0_i32 = arith.constant 0 : i32
    %c0_i32_0 = arith.constant 0 : i32
    %c0_i32_1 = arith.constant 0 : i32
    return %c0_i32, %c0_i32_0 : i32, i32
  }
  func.func @transform_2(%arg0: i32) -> (i32, i32) {
    %c0_i32 = arith.constant 0 : i32
    %c0_i32_0 = arith.constant 0 : i32
    return %arg0, %c0_i32 : i32, i32
  }
}

</mosaic_0001>

<llo_original>
// kernel: tpu_custom_call.1
$region0: #{tpu_custom_call.1}
  #allocation0 [shape = 'u32[]', space=smem, size = 0x4, offset = 0x4, fixed_abs, tag = 'smem constant byte address 0x4 - core index']
  #allocation1 [shape = 'u32[144,128]{1,0:T(1,128)}', space=vmem, size = 0x12000, scoped, tag = 'internal scratch']
  %s0 = inlined_call_operand.vmem [shape: s32[256,4], index: 0, kind: input, shape index: {}]
  %s1 = inlined_call_operand.hbm [shape: f32[512,128], index: 1, kind: input, shape index: {}]
  %s2 = inlined_call_operand.hbm [shape: f32[256,128], index: 2, kind: output, shape index: {}]
  %s3 = sld [smem:[#allocation0]]
  $region45: #{tpu_custom_call.1} parent=0
    _
  %s5 = ssub.s32 1, %s3
  %s6 = scalar_select 0, %s5, %s3
  $region1: #{tpu_custom_call.1} parent=0
    #allocation2 [shape = 'u8[262144]{0}', space=vmem, size = 0x40000, scoped, tag = 'input window, operand 1, single buffered']
    #allocation3 [shape = 's32[2]{0}', space=sflag, size = 0x8, scoped, tag = 'scoped memory for tpu_custom_call.1']
    #allocation4 [shape = 's32[2]{0}', space=sflag, size = 0x8, scoped, tag = 'scoped memory for tpu_custom_call.1']
    #allocation5 [shape = 'u8[131072]{0}', space=vmem, size = 0x20000, scoped, tag = 'output window, operand 0']
    %7 = vsyncpa [#allocation3], 0
    %8 = vsyncpa [#allocation4], 0
    %s9 = scalar_lea.sflag [#allocation4], 1
    %10 = vsyncpa %s9, 0
    loop: start=0, step=1, limit=4
    $region2: #{tpu_custom_call.1} parent=1 // loop_pre_header
      _
    $region3: #{tpu_custom_call.1} parent=1 // loop_header
      %s12 = sphi 0, %s16
      %p13 = scmp.ge.s32.totalorder %s12, 4
      %s22 = sphi 0, %s24
      %s25 = sphi 0, %s22
      %s26 = sphi 0, %s25
      %s42 = sphi 0, %s26
      %s46 = sphi 0, %s46
      %s48 = sphi 0, %s46
      %s49 = sphi 0, %s48
      %s63 = sphi 0, %s49
      %s69 = sphi 0, %s71
      %s72 = sphi 0, %s69
      %s73 = sphi 0, %s72
      %s89 = sphi 0, %s73
    $region4: #{tpu_custom_call.1} parent=1 // loop_header_branch
      %15 = sbr.rel (%p13) target = $region8
    $region5: #{tpu_custom_call.1} parent=1 // loop_body
      %s17 = ssub.s32 %s12, 1
      %s18 = ssub.s32 %s12, 2
      %s19 = sadd.s32 %s12, 1
      %s20 = ssub.s32 %s12, %s19
      %p21 = scmp.eq.s32.totalorder %s20, 0
      %s23 = sadd.s32 %s22, 1
      %s24 = scalar_select %p21, %s22, %s23
      %p27 = pneg %p21
      %p28 = scmp.eq.s32.totalorder %s12, 1
      %p29 = por %p27, %p28
      %p30 = scmp.ne.s32.totalorder %s22, %s25
      %p31 = scmp.eq.s32.totalorder %s12, 0
      %p32 = por %p30, %p31
      %p33 = scmp.ne.s32.totalorder %s22, %s25
      %p34 = scmp.eq.s32.totalorder %s17, 1
      %p35 = por %p33, %p34
      %p36 = scmp.ne.s32.totalorder %s25, %s26
      %p37 = scmp.eq.s32.totalorder %s17, 0
      %p38 = por %p36, %p37
      %p39 = scmp.ne.s32.totalorder %s25, %s26
      %p40 = scmp.eq.s32.totalorder %s18, 1
      %p41 = por %p39, %p40
      %p43 = scmp.ne.s32.totalorder %s26, %s42
      %p44 = scmp.eq.s32.totalorder %s18, 0
      %p45 = por %p43, %p44
      %s47 = sadd.s32 %s46, 1
      %p50 = scmp.eq.s32.totalorder %s12, 1
      %p51 = scmp.ne.s32.totalorder %s46, %s48
      %p52 = scmp.eq.s32.totalorder %s12, 0
      %p53 = por %p51, %p52
      %p54 = scmp.ne.s32.totalorder %s46, %s48
      %p55 = scmp.eq.s32.totalorder %s17, 1
      %p56 = por %p54, %p55
      %p57 = scmp.ne.s32.totalorder %s48, %s49
      %p58 = scmp.eq.s32.totalorder %s17, 0
      %p59 = por %p57, %p58
      %p60 = scmp.ne.s32.totalorder %s48, %s49
      %p61 = scmp.eq.s32.totalorder %s18, 1
      %p62 = por %p60, %p61
      %p64 = scmp.ne.s32.totalorder %s49, %s63
      %p65 = scmp.eq.s32.totalorder %s18, 0
      %p66 = por %p64, %p65
      %s67 = ssub.s32 %s12, %s19
      %p68 = scmp.eq.s32.totalorder %s67, 0
      %s70 = sadd.s32 %s69, 1
      %s71 = scalar_select %p68, %s69, %s70
      %p74 = pneg %p68
      %p75 = scmp.eq.s32.totalorder %s12, 1
      %p76 = por %p74, %p75
      %p77 = scmp.ne.s32.totalorder %s69, %s72
      %p78 = scmp.eq.s32.totalorder %s12, 0
      %p79 = por %p77, %p78
      %p80 = scmp.ne.s32.totalorder %s69, %s72
      %p81 = scmp.eq.s32.totalorder %s17, 1
      %p82 = por %p80, %p81
      %p83 = scmp.ne.s32.totalorder %s72, %s73
      %p84 = scmp.eq.s32.totalorder %s17, 0
      %p85 = por %p83, %p84
      %p86 = scmp.ne.s32.totalorder %s72, %s73
      %p87 = scmp.eq.s32.totalorder %s18, 1
      %p88 = por %p86, %p87
      %p90 = scmp.ne.s32.totalorder %s73, %s89
      %p91 = scmp.eq.s32.totalorder %s18, 0
      %p92 = por %p90, %p91
      %p93 = scmp.le.s32.totalorder 1, %s12
      %p94 = scmp.lt.s32.totalorder %s12, 3
      %p95 = pnand %p93, %p94
      %p96 = pneg %p95
      // Predicated region
      $region9: #{tpu_custom_call.1} parent=5 // pred_check
        _
      $region10: #{tpu_custom_call.1} parent=5 // pred_check_branch
        %98 = sbr.rel (%p95) target = $region12
      $region11: #{tpu_custom_call.1} parent=5 // pred_region
        %s99 = ssub.s32 %s12, 1
        // Predicated region
        $region13: #{tpu_custom_call.1} parent=11 // pred_check
          %p100 = pneg %p59
        $region14: #{tpu_custom_call.1} parent=11 // pred_check_branch
          %102 = sbr.rel (%p100) target = $region16
        $region15: #{tpu_custom_call.1} parent=11 // pred_region
          %s104 = ssub.s32 8192, 8192
          %105 = vsyncadd [#allocation3], %s104
          %s106 = sshll.u32 [#allocation2], 4
          %s107 = int_to_ptr.vmem [resolvable:$true] %s106
          %112 = dma.hbm_to_vmem [thread:$0]  %s1, 8192, %s107, [#allocation3], 128, 128, 8
        $region16: #{tpu_custom_call.1} parent=11 // pred_fallthru
          _
      $region12: #{tpu_custom_call.1} parent=5 // pred_fallthru
        _
      %p113 = scmp.lt.s32.totalorder %s12, 2
      // Predicated region
      $region17: #{tpu_custom_call.1} parent=5 // pred_check
        %p114 = pneg %p113
      $region18: #{tpu_custom_call.1} parent=5 // pred_check_branch
        %116 = sbr.rel (%p114) target = $region20
      $region19: #{tpu_custom_call.1} parent=5 // pred_region
        // Predicated region
        $region21: #{tpu_custom_call.1} parent=19 // pred_check
          %p117 = pneg %p32
        $region22: #{tpu_custom_call.1} parent=19 // pred_check_branch
          %119 = sbr.rel (%p117) target = $region24
        $region23: #{tpu_custom_call.1} parent=19 // pred_region
          %s120 = smul.u32 16, %s12
          %p121 = scmp.lt.s32.totalorder %s120, 31
          %s122 = scalar_select %p121, %s120, 31
          %s123 = smul.addr %s122, 8
          %s124 = scalar_lea.vmem %s0, %s123
          %s125 = smul.u32 16, %s12
        $region24: #{tpu_custom_call.1} parent=19 // pred_fallthru
          _
      $region20: #{tpu_custom_call.1} parent=5 // pred_fallthru
        _
      %p126 = scmp.le.s32.totalorder 1, %s12
      %p127 = scmp.lt.s32.totalorder %s12, 3
      %p128 = pnand %p126, %p127
      %p129 = pneg %p128
      // Predicated region
      $region25: #{tpu_custom_call.1} parent=5 // pred_check
        _
      $region26: #{tpu_custom_call.1} parent=5 // pred_check_branch
        %131 = sbr.rel (%p128) target = $region28
      $region27: #{tpu_custom_call.1} parent=5 // pred_region
        %s132 = ssub.s32 %s12, 1
        // Predicated region
        $region29: #{tpu_custom_call.1} parent=27 // pred_check
          %p133 = pneg %p59
        $region30: #{tpu_custom_call.1} parent=27 // pred_check_branch
          %135 = sbr.rel (%p133) target = $region32
        $region31: #{tpu_custom_call.1} parent=27 // pred_region
          %136 = dma.done [#allocation3], 8192
        $region32: #{tpu_custom_call.1} parent=27 // pred_fallthru
          _
        %s137 = smul.u32 16, %s17
        %p138 = scmp.lt.s32.totalorder %s137, 31
        %s139 = scalar_select %p138, %s137, 31
        %s140 = smul.addr %s139, 8
        %s141 = scalar_lea.vmem %s0, %s140
        %p142 = pneg %p38
        %p143 = pneg %p35
        %p144 = pneg %p59
        %p145 = pneg %p56
        %p146 = pneg %p85
        %p147 = pneg %p82
        %s148 = sand.u32 %s72, 1
        %s149 = scalar_lea.sflag [#allocation4], %s148
        %s150 = sand.u32 %s72, 1
        %s151 = smul.addr %s150, 128
        %s152 = scalar_lea.vmem [#allocation5], %s151
        %s153 = smul.u32 16, %s17
        %p154 = scmp.lt.s32.totalorder %s153, 31
        %s155 = scalar_select %p154, %s153, 31
        %s156 = smul.addr %s155, 8
        %s157 = scalar_lea.vmem %s0, %s156
        %s158 = smul.u32 16, %s17
        %s159 = smul.u32 16, %s17
        %v160 = vld [vmem:[%s157] sm:$0xff]
        %v161 = vld [vmem:[%s157 + $0x8] sm:$0xff]
        %v162 = vld [vmem:[%s157 + $0x10] sm:$0xff]
        %v163 = vld [vmem:[%s157 + $0x18] sm:$0xff]
        %v164 = vld [vmem:[%s157 + $0x20] sm:$0xff]
        %v165 = vld [vmem:[%s157 + $0x28] sm:$0xff]
        %v166 = vld [vmem:[%s157 + $0x30] sm:$0xff]
        %v167 = vld [vmem:[%s157 + $0x38] sm:$0xff]
        %v168 = vld [vmem:[%s157 + $0x40] sm:$0xff]
        %v169 = vld [vmem:[%s157 + $0x48] sm:$0xff]
        %v170 = vld [vmem:[%s157 + $0x50] sm:$0xff]
        %v171 = vld [vmem:[%s157 + $0x58] sm:$0xff]
        %v172 = vld [vmem:[%s157 + $0x60] sm:$0xff]
        %v173 = vld [vmem:[%s157 + $0x68] sm:$0xff]
        %v174 = vld [vmem:[%s157 + $0x70] sm:$0xff]
        %v175 = vld [vmem:[%s157 + $0x78] sm:$0xff]
        %v176 = vlaneseq
        %v177 = vand.u32 %v176, 127
        %178 = vset.pattern.permute.xlu0 0
        %179 = vperm.xlu0 %178, %v160
        %v180 = vpop.permute.xlu0 %179
        %181 = vset.pattern.permute.xlu0 0
        %182 = vperm.xlu0 %181, %v161
        %v183 = vpop.permute.xlu0 %182
        %184 = vset.pattern.permute.xlu0 0
        %185 = vperm.xlu0 %184, %v162
        %v186 = vpop.permute.xlu0 %185
        %187 = vset.pattern.permute.xlu0 0
        %188 = vperm.xlu0 %187, %v163
        %v189 = vpop.permute.xlu0 %188
        %190 = vset.pattern.permute.xlu0 0
        %191 = vperm.xlu0 %190, %v164
        %v192 = vpop.permute.xlu0 %191
        %193 = vset.pattern.permute.xlu0 0
        %194 = vperm.xlu0 %193, %v165
        %v195 = vpop.permute.xlu0 %194
        %196 = vset.pattern.permute.xlu0 0
        %197 = vperm.xlu0 %196, %v166
        %v198 = vpop.permute.xlu0 %197
        %199 = vset.pattern.permute.xlu0 0
        %200 = vperm.xlu0 %199, %v167
        %v201 = vpop.permute.xlu0 %200
        %202 = vset.pattern.permute.xlu0 0
        %203 = vperm.xlu0 %202, %v168
        %v204 = vpop.permute.xlu0 %203
        %205 = vset.pattern.permute.xlu0 0
        %206 = vperm.xlu0 %205, %v169
        %v207 = vpop.permute.xlu0 %206
        %208 = vset.pattern.permute.xlu0 0
        %209 = vperm.xlu0 %208, %v170
        %v210 = vpop.permute.xlu0 %209
        %211 = vset.pattern.permute.xlu0 0
        %212 = vperm.xlu0 %211, %v171
        %v213 = vpop.permute.xlu0 %212
        %214 = vset.pattern.permute.xlu0 0
        %215 = vperm.xlu0 %214, %v172
        %v216 = vpop.permute.xlu0 %215
        %217 = vset.pattern.permute.xlu0 0
        %218 = vperm.xlu0 %217, %v173
        %v219 = vpop.permute.xlu0 %218
        %220 = vset.pattern.permute.xlu0 0
        %221 = vperm.xlu0 %220, %v174
        %v222 = vpop.permute.xlu0 %221
        %223 = vset.pattern.permute.xlu0 0
        %224 = vperm.xlu0 %223, %v175
        %v225 = vpop.permute.xlu0 %224
        %vm226 = vcmp.eq.s32.totalorder %v177, %v180
        %vm227 = vcmp.eq.s32.totalorder %v177, %v183
        %vm228 = vcmp.eq.s32.totalorder %v177, %v186
        %vm229 = vcmp.eq.s32.totalorder %v177, %v189
        %vm230 = vcmp.eq.s32.totalorder %v177, %v192
        %vm231 = vcmp.eq.s32.totalorder %v177, %v195
        %vm232 = vcmp.eq.s32.totalorder %v177, %v198
        %vm233 = vcmp.eq.s32.totalorder %v177, %v201
        %vm234 = vcmp.eq.s32.totalorder %v177, %v204
        %vm235 = vcmp.eq.s32.totalorder %v177, %v207
        %vm236 = vcmp.eq.s32.totalorder %v177, %v210
        %vm237 = vcmp.eq.s32.totalorder %v177, %v213
        %vm238 = vcmp.eq.s32.totalorder %v177, %v216
        %vm239 = vcmp.eq.s32.totalorder %v177, %v219
        %vm240 = vcmp.eq.s32.totalorder %v177, %v222
        %vm241 = vcmp.eq.s32.totalorder %v177, %v225
        %v242 = vsel %vm226, 1, 0
        %v243 = vsel %vm227, 1, 0
        %v244 = vsel %vm228, 1, 0
        %v245 = vsel %vm229, 1, 0
        %v246 = vsel %vm230, 1, 0
        %v247 = vsel %vm231, 1, 0
        %v248 = vsel %vm232, 1, 0
        %v249 = vsel %vm233, 1, 0
        %v250 = vsel %vm234, 1, 0
        %v251 = vsel %vm235, 1, 0
        %v252 = vsel %vm236, 1, 0
        %v253 = vsel %vm237, 1, 0
        %v254 = vsel %vm238, 1, 0
        %v255 = vsel %vm239, 1, 0
        %v256 = vsel %vm240, 1, 0
        %v257 = vsel %vm241, 1, 0
        %v258 = vcvt.s32.f32 %v242
        %v259 = vcvt.s32.f32 %v243
        %v260 = vcvt.s32.f32 %v244
        %v261 = vcvt.s32.f32 %v245
        %v262 = vcvt.s32.f32 %v246
        %v263 = vcvt.s32.f32 %v247
        %v264 = vcvt.s32.f32 %v248
        %v265 = vcvt.s32.f32 %v249
        %v266 = vcvt.s32.f32 %v250
        %v267 = vcvt.s32.f32 %v251
        %v268 = vcvt.s32.f32 %v252
        %v269 = vcvt.s32.f32 %v253
        %v270 = vcvt.s32.f32 %v254
        %v271 = vcvt.s32.f32 %v255
        %v272 = vcvt.s32.f32 %v256
        %v273 = vcvt.s32.f32 %v257
        %274 = vset.pattern.permute.xlu0 1
        %275 = vperm.xlu0 %274, %v160
        %v276 = vpop.permute.xlu0 %275
        %277 = vset.pattern.permute.xlu0 1
        %278 = vperm.xlu0 %277, %v161
        %v279 = vpop.permute.xlu0 %278
        %280 = vset.pattern.permute.xlu0 1
        %281 = vperm.xlu0 %280, %v162
        %v282 = vpop.permute.xlu0 %281
        %283 = vset.pattern.permute.xlu0 1
        %284 = vperm.xlu0 %283, %v163
        %v285 = vpop.permute.xlu0 %284
        %286 = vset.pattern.permute.xlu0 1
        %287 = vperm.xlu0 %286, %v164
        %v288 = vpop.permute.xlu0 %287
        %289 = vset.pattern.permute.xlu0 1
        %290 = vperm.xlu0 %289, %v165
        %v291 = vpop.permute.xlu0 %290
        %292 = vset.pattern.permute.xlu0 1
        %293 = vperm.xlu0 %292, %v166
        %v294 = vpop.permute.xlu0 %293
        %295 = vset.pattern.permute.xlu0 1
        %296 = vperm.xlu0 %295, %v167
        %v297 = vpop.permute.xlu0 %296
        %298 = vset.pattern.permute.xlu0 1
        %299 = vperm.xlu0 %298, %v168
        %v300 = vpop.permute.xlu0 %299
        %301 = vset.pattern.permute.xlu0 1
        %302 = vperm.xlu0 %301, %v169
        %v303 = vpop.permute.xlu0 %302
        %304 = vset.pattern.permute.xlu0 1
        %305 = vperm.xlu0 %304, %v170
        %v306 = vpop.permute.xlu0 %305
        %307 = vset.pattern.permute.xlu0 1
        %308 = vperm.xlu0 %307, %v171
        %v309 = vpop.permute.xlu0 %308
        %310 = vset.pattern.permute.xlu0 1
        %311 = vperm.xlu0 %310, %v172
        %v312 = vpop.permute.xlu0 %311
        %313 = vset.pattern.permute.xlu0 1
        %314 = vperm.xlu0 %313, %v173
        %v315 = vpop.permute.xlu0 %314
        %316 = vset.pattern.permute.xlu0 1
        %317 = vperm.xlu0 %316, %v174
        %v318 = vpop.permute.xlu0 %317
        %319 = vset.pattern.permute.xlu0 1
        %320 = vperm.xlu0 %319, %v175
        %v321 = vpop.permute.xlu0 %320
        %vm322 = vcmp.eq.s32.totalorder %v177, %v276
        %vm323 = vcmp.eq.s32.totalorder %v177, %v279
        %vm324 = vcmp.eq.s32.totalorder %v177, %v282
        %vm325 = vcmp.eq.s32.totalorder %v177, %v285
        %vm326 = vcmp.eq.s32.totalorder %v177, %v288
        %vm327 = vcmp.eq.s32.totalorder %v177, %v291
        %vm328 = vcmp.eq.s32.totalorder %v177, %v294
        %vm329 = vcmp.eq.s32.totalorder %v177, %v297
        %vm330 = vcmp.eq.s32.totalorder %v177, %v300
        %vm331 = vcmp.eq.s32.totalorder %v177, %v303
        %vm332 = vcmp.eq.s32.totalorder %v177, %v306
        %vm333 = vcmp.eq.s32.totalorder %v177, %v309
        %vm334 = vcmp.eq.s32.totalorder %v177, %v312
        %vm335 = vcmp.eq.s32.totalorder %v177, %v315
        %vm336 = vcmp.eq.s32.totalorder %v177, %v318
        %vm337 = vcmp.eq.s32.totalorder %v177, %v321
        %v338 = vsel %vm322, 1, 0
        %v339 = vsel %vm323, 1, 0
        %v340 = vsel %vm324, 1, 0
        %v341 = vsel %vm325, 1, 0
        %v342 = vsel %vm326, 1, 0
        %v343 = vsel %vm327, 1, 0
        %v344 = vsel %vm328, 1, 0
        %v345 = vsel %vm329, 1, 0
        %v346 = vsel %vm330, 1, 0
        %v347 = vsel %vm331, 1, 0
        %v348 = vsel %vm332, 1, 0
        %v349 = vsel %vm333, 1, 0
        %v350 = vsel %vm334, 1, 0
        %v351 = vsel %vm335, 1, 0
        %v352 = vsel %vm336, 1, 0
        %v353 = vsel %vm337, 1, 0
        %v354 = vcvt.s32.f32 %v338
        %v355 = vcvt.s32.f32 %v339
        %v356 = vcvt.s32.f32 %v340
        %v357 = vcvt.s32.f32 %v341
        %v358 = vcvt.s32.f32 %v342
        %v359 = vcvt.s32.f32 %v343
        %v360 = vcvt.s32.f32 %v344
        %v361 = vcvt.s32.f32 %v345
        %v362 = vcvt.s32.f32 %v346
        %v363 = vcvt.s32.f32 %v347
        %v364 = vcvt.s32.f32 %v348
        %v365 = vcvt.s32.f32 %v349
        %v366 = vcvt.s32.f32 %v350
        %v367 = vcvt.s32.f32 %v351
        %v368 = vcvt.s32.f32 %v352
        %v369 = vcvt.s32.f32 %v353
        %370 = vset.pattern.permute.xlu0 2
        %371 = vperm.xlu0 %370, %v160
        %v372 = vpop.permute.xlu0 %371
        %373 = vset.pattern.permute.xlu0 2
        %374 = vperm.xlu0 %373, %v161
        %v375 = vpop.permute.xlu0 %374
        %376 = vset.pattern.permute.xlu0 2
        %377 = vperm.xlu0 %376, %v162
        %v378 = vpop.permute.xlu0 %377
        %379 = vset.pattern.permute.xlu0 2
        %380 = vperm.xlu0 %379, %v163
        %v381 = vpop.permute.xlu0 %380
        %382 = vset.pattern.permute.xlu0 2
        %383 = vperm.xlu0 %382, %v164
        %v384 = vpop.permute.xlu0 %383
        %385 = vset.pattern.permute.xlu0 2
        %386 = vperm.xlu0 %385, %v165
        %v387 = vpop.permute.xlu0 %386
        %388 = vset.pattern.permute.xlu0 2
        %389 = vperm.xlu0 %388, %v166
        %v390 = vpop.permute.xlu0 %389
        %391 = vset.pattern.permute.xlu0 2
        %392 = vperm.xlu0 %391, %v167
        %v393 = vpop.permute.xlu0 %392
        %394 = vset.pattern.permute.xlu0 2
        %395 = vperm.xlu0 %394, %v168
        %v396 = vpop.permute.xlu0 %395
        %397 = vset.pattern.permute.xlu0 2
        %398 = vperm.xlu0 %397, %v169
        %v399 = vpop.permute.xlu0 %398
        %400 = vset.pattern.permute.xlu0 2
        %401 = vperm.xlu0 %400, %v170
        %v402 = vpop.permute.xlu0 %401
        %403 = vset.pattern.permute.xlu0 2
        %404 = vperm.xlu0 %403, %v171
        %v405 = vpop.permute.xlu0 %404
        %406 = vset.pattern.permute.xlu0 2
        %407 = vperm.xlu0 %406, %v172
        %v408 = vpop.permute.xlu0 %407
        %409 = vset.pattern.permute.xlu0 2
        %410 = vperm.xlu0 %409, %v173
        %v411 = vpop.permute.xlu0 %410
        %412 = vset.pattern.permute.xlu0 2
        %413 = vperm.xlu0 %412, %v174
        %v414 = vpop.permute.xlu0 %413
        %415 = vset.pattern.permute.xlu0 2
        %416 = vperm.xlu0 %415, %v175
        %v417 = vpop.permute.xlu0 %416
        %vm418 = vcmp.eq.s32.totalorder %v177, %v372
        %vm419 = vcmp.eq.s32.totalorder %v177, %v375
        %vm420 = vcmp.eq.s32.totalorder %v177, %v378
        %vm421 = vcmp.eq.s32.totalorder %v177, %v381
        %vm422 = vcmp.eq.s32.totalorder %v177, %v384
        %vm423 = vcmp.eq.s32.totalorder %v177, %v387
        %vm424 = vcmp.eq.s32.totalorder %v177, %v390
        %vm425 = vcmp.eq.s32.totalorder %v177, %v393
        %vm426 = vcmp.eq.s32.totalorder %v177, %v396
        %vm427 = vcmp.eq.s32.totalorder %v177, %v399
        %vm428 = vcmp.eq.s32.totalorder %v177, %v402
        %vm429 = vcmp.eq.s32.totalorder %v177, %v405
        %vm430 = vcmp.eq.s32.totalorder %v177, %v408
        %vm431 = vcmp.eq.s32.totalorder %v177, %v411
        %vm432 = vcmp.eq.s32.totalorder %v177, %v414
        %vm433 = vcmp.eq.s32.totalorder %v177, %v417
        %v434 = vsel %vm418, 1, 0
        %v435 = vsel %vm419, 1, 0
        %v436 = vsel %vm420, 1, 0
        %v437 = vsel %vm421, 1, 0
        %v438 = vsel %vm422, 1, 0
        %v439 = vsel %vm423, 1, 0
        %v440 = vsel %vm424, 1, 0
        %v441 = vsel %vm425, 1, 0
        %v442 = vsel %vm426, 1, 0
        %v443 = vsel %vm427, 1, 0
        %v444 = vsel %vm428, 1, 0
        %v445 = vsel %vm429, 1, 0
        %v446 = vsel %vm430, 1, 0
        %v447 = vsel %vm431, 1, 0
        %v448 = vsel %vm432, 1, 0
        %v449 = vsel %vm433, 1, 0
        %v450 = vcvt.s32.f32 %v434
        %v451 = vcvt.s32.f32 %v435
        %v452 = vcvt.s32.f32 %v436
        %v453 = vcvt.s32.f32 %v437
        %v454 = vcvt.s32.f32 %v438
        %v455 = vcvt.s32.f32 %v439
        %v456 = vcvt.s32.f32 %v440
        %v457 = vcvt.s32.f32 %v441
        %v458 = vcvt.s32.f32 %v442
        %v459 = vcvt.s32.f32 %v443
        %v460 = vcvt.s32.f32 %v444
        %v461 = vcvt.s32.f32 %v445
        %v462 = vcvt.s32.f32 %v446
        %v463 = vcvt.s32.f32 %v447
        %v464 = vcvt.s32.f32 %v448
        %v465 = vcvt.s32.f32 %v449
        %466 = vset.pattern.permute.xlu0 3
        %467 = vperm.xlu0 %466, %v160
        %v468 = vpop.permute.xlu0 %467
        %469 = vset.pattern.permute.xlu0 3
        %470 = vperm.xlu0 %469, %v161
        %v471 = vpop.permute.xlu0 %470
        %472 = vset.pattern.permute.xlu0 3
        %473 = vperm.xlu0 %472, %v162
        %v474 = vpop.permute.xlu0 %473
        %475 = vset.pattern.permute.xlu0 3
        %476 = vperm.xlu0 %475, %v163
        %v477 = vpop.permute.xlu0 %476
        %478 = vset.pattern.permute.xlu0 3
        %479 = vperm.xlu0 %478, %v164
        %v480 = vpop.permute.xlu0 %479
        %481 = vset.pattern.permute.xlu0 3
        %482 = vperm.xlu0 %481, %v165
        %v483 = vpop.permute.xlu0 %482
        %484 = vset.pattern.permute.xlu0 3
        %485 = vperm.xlu0 %484, %v166
        %v486 = vpop.permute.xlu0 %485
        %487 = vset.pattern.permute.xlu0 3
        %488 = vperm.xlu0 %487, %v167
        %v489 = vpop.permute.xlu0 %488
        %490 = vset.pattern.permute.xlu0 3
        %491 = vperm.xlu0 %490, %v168
        %v492 = vpop.permute.xlu0 %491
        %493 = vset.pattern.permute.xlu0 3
        %494 = vperm.xlu0 %493, %v169
        %v495 = vpop.permute.xlu0 %494
        %496 = vset.pattern.permute.xlu0 3
        %497 = vperm.xlu0 %496, %v170
        %v498 = vpop.permute.xlu0 %497
        %499 = vset.pattern.permute.xlu0 3
        %500 = vperm.xlu0 %499, %v171
        %v501 = vpop.permute.xlu0 %500
        %502 = vset.pattern.permute.xlu0 3
        %503 = vperm.xlu0 %502, %v172
        %v504 = vpop.permute.xlu0 %503
        %505 = vset.pattern.permute.xlu0 3
        %506 = vperm.xlu0 %505, %v173
        %v507 = vpop.permute.xlu0 %506
        %508 = vset.pattern.permute.xlu0 3
        %509 = vperm.xlu0 %508, %v174
        %v510 = vpop.permute.xlu0 %509
        %511 = vset.pattern.permute.xlu0 3
        %512 = vperm.xlu0 %511, %v175
        %v513 = vpop.permute.xlu0 %512
        %vm514 = vcmp.eq.s32.totalorder %v177, %v468
        %vm515 = vcmp.eq.s32.totalorder %v177, %v471
        %vm516 = vcmp.eq.s32.totalorder %v177, %v474
        %vm517 = vcmp.eq.s32.totalorder %v177, %v477
        %vm518 = vcmp.eq.s32.totalorder %v177, %v480
        %vm519 = vcmp.eq.s32.totalorder %v177, %v483
        %vm520 = vcmp.eq.s32.totalorder %v177, %v486
        %vm521 = vcmp.eq.s32.totalorder %v177, %v489
        %vm522 = vcmp.eq.s32.totalorder %v177, %v492
        %vm523 = vcmp.eq.s32.totalorder %v177, %v495
        %vm524 = vcmp.eq.s32.totalorder %v177, %v498
        %vm525 = vcmp.eq.s32.totalorder %v177, %v501
        %vm526 = vcmp.eq.s32.totalorder %v177, %v504
        %vm527 = vcmp.eq.s32.totalorder %v177, %v507
        %vm528 = vcmp.eq.s32.totalorder %v177, %v510
        %vm529 = vcmp.eq.s32.totalorder %v177, %v513
        %v530 = vsel %vm514, 1, 0
        %v531 = vsel %vm515, 1, 0
        %v532 = vsel %vm516, 1, 0
        %v533 = vsel %vm517, 1, 0
        %v534 = vsel %vm518, 1, 0
        %v535 = vsel %vm519, 1, 0
        %v536 = vsel %vm520, 1, 0
        %v537 = vsel %vm521, 1, 0
        %v538 = vsel %vm522, 1, 0
        %v539 = vsel %vm523, 1, 0
        %v540 = vsel %vm524, 1, 0
        %v541 = vsel %vm525, 1, 0
        %v542 = vsel %vm526, 1, 0
        %v543 = vsel %vm527, 1, 0
        %v544 = vsel %vm528, 1, 0
        %v545 = vsel %vm529, 1, 0
        %v546 = vcvt.s32.f32 %v530
        %v547 = vcvt.s32.f32 %v531
        %v548 = vcvt.s32.f32 %v532
        %v549 = vcvt.s32.f32 %v533
        %v550 = vcvt.s32.f32 %v534
        %v551 = vcvt.s32.f32 %v535
        %v552 = vcvt.s32.f32 %v536
        %v553 = vcvt.s32.f32 %v537
        %v554 = vcvt.s32.f32 %v538
        %v555 = vcvt.s32.f32 %v539
        %v556 = vcvt.s32.f32 %v540
        %v557 = vcvt.s32.f32 %v541
        %v558 = vcvt.s32.f32 %v542
        %v559 = vcvt.s32.f32 %v543
        %v560 = vcvt.s32.f32 %v544
        %v561 = vcvt.s32.f32 %v545
        %v562 = vld [vmem:[#allocation2] sm:$0xff]
        %v563 = vld [vmem:[#allocation2 + $0x8] sm:$0xff]
        %v564 = vld [vmem:[#allocation2 + $0x10] sm:$0xff]
        %v565 = vld [vmem:[#allocation2 + $0x18] sm:$0xff]
        %v566 = vld [vmem:[#allocation2 + $0x20] sm:$0xff]
        %v567 = vld [vmem:[#allocation2 + $0x28] sm:$0xff]
        %v568 = vld [vmem:[#allocation2 + $0x30] sm:$0xff]
        %v569 = vld [vmem:[#allocation2 + $0x38] sm:$0xff]
        %v570 = vld [vmem:[#allocation2 + $0x40] sm:$0xff]
        %v571 = vld [vmem:[#allocation2 + $0x48] sm:$0xff]
        %v572 = vld [vmem:[#allocation2 + $0x50] sm:$0xff]
        %v573 = vld [vmem:[#allocation2 + $0x58] sm:$0xff]
        %v574 = vld [vmem:[#allocation2 + $0x60] sm:$0xff]
        %v575 = vld [vmem:[#allocation2 + $0x68] sm:$0xff]
        %v576 = vld [vmem:[#allocation2 + $0x70] sm:$0xff]
        %v577 = vld [vmem:[#allocation2 + $0x78] sm:$0xff]
        %v578 = vld [vmem:[#allocation2 + $0x80] sm:$0xff]
        %v579 = vld [vmem:[#allocation2 + $0x88] sm:$0xff]
        %v580 = vld [vmem:[#allocation2 + $0x90] sm:$0xff]
        %v581 = vld [vmem:[#allocation2 + $0x98] sm:$0xff]
        %v582 = vld [vmem:[#allocation2 + $0xa0] sm:$0xff]
        %v583 = vld [vmem:[#allocation2 + $0xa8] sm:$0xff]
        %v584 = vld [vmem:[#allocation2 + $0xb0] sm:$0xff]
        %v585 = vld [vmem:[#allocation2 + $0xb8] sm:$0xff]
        %v586 = vld [vmem:[#allocation2 + $0xc0] sm:$0xff]
        %v587 = vld [vmem:[#allocation2 + $0xc8] sm:$0xff]
        %v588 = vld [vmem:[#allocation2 + $0xd0] sm:$0xff]
        %v589 = vld [vmem:[#allocation2 + $0xd8] sm:$0xff]
        %v590 = vld [vmem:[#allocation2 + $0xe0] sm:$0xff]
        %v591 = vld [vmem:[#allocation2 + $0xe8] sm:$0xff]
        %v592 = vld [vmem:[#allocation2 + $0xf0] sm:$0xff]
        %v593 = vld [vmem:[#allocation2 + $0xf8] sm:$0xff]
        %v594 = vld [vmem:[#allocation2 + $0x100] sm:$0xff]
        %v595 = vld [vmem:[#allocation2 + $0x108] sm:$0xff]
        %v596 = vld [vmem:[#allocation2 + $0x110] sm:$0xff]
        %v597 = vld [vmem:[#allocation2 + $0x118] sm:$0xff]
        %v598 = vld [vmem:[#allocation2 + $0x120] sm:$0xff]
        %v599 = vld [vmem:[#allocation2 + $0x128] sm:$0xff]
        %v600 = vld [vmem:[#allocation2 + $0x130] sm:$0xff]
        %v601 = vld [vmem:[#allocation2 + $0x138] sm:$0xff]
        %v602 = vld [vmem:[#allocation2 + $0x140] sm:$0xff]
        %v603 = vld [vmem:[#allocation2 + $0x148] sm:$0xff]
        %v604 = vld [vmem:[#allocation2 + $0x150] sm:$0xff]
        %v605 = vld [vmem:[#allocation2 + $0x158] sm:$0xff]
        %v606 = vld [vmem:[#allocation2 + $0x160] sm:$0xff]
        %v607 = vld [vmem:[#allocation2 + $0x168] sm:$0xff]
        %v608 = vld [vmem:[#allocation2 + $0x170] sm:$0xff]
        %v609 = vld [vmem:[#allocation2 + $0x178] sm:$0xff]
        %v610 = vld [vmem:[#allocation2 + $0x180] sm:$0xff]
        %v611 = vld [vmem:[#allocation2 + $0x188] sm:$0xff]
        %v612 = vld [vmem:[#allocation2 + $0x190] sm:$0xff]
        %v613 = vld [vmem:[#allocation2 + $0x198] sm:$0xff]
        %v614 = vld [vmem:[#allocation2 + $0x1a0] sm:$0xff]
        %v615 = vld [vmem:[#allocation2 + $0x1a8] sm:$0xff]
        %v616 = vld [vmem:[#allocation2 + $0x1b0] sm:$0xff]
        %v617 = vld [vmem:[#allocation2 + $0x1b8] sm:$0xff]
        %v618 = vld [vmem:[#allocation2 + $0x1c0] sm:$0xff]
        %v619 = vld [vmem:[#allocation2 + $0x1c8] sm:$0xff]
        %v620 = vld [vmem:[#allocation2 + $0x1d0] sm:$0xff]
        %v621 = vld [vmem:[#allocation2 + $0x1d8] sm:$0xff]
        %v622 = vld [vmem:[#allocation2 + $0x1e0] sm:$0xff]
        %v623 = vld [vmem:[#allocation2 + $0x1e8] sm:$0xff]
        %v624 = vld [vmem:[#allocation2 + $0x1f0] sm:$0xff]
        %v625 = vld [vmem:[#allocation2 + $0x1f8] sm:$0xff]
        %626 = vmatprep.subr.mxu0 0.0
        %627 = vmatpush1.msra.mxu0 %v562
        %628 = vmatprep.subr.mxu0 0.0
        %629 = vmatpush1.msra.mxu0 %v563
        %630 = vmatprep.subr.mxu0 0.0
        %631 = vmatpush1.msra.mxu0 %v564
        %632 = vmatprep.subr.mxu0 0.0
        %633 = vmatpush1.msra.mxu0 %v565
        %634 = vmatprep.subr.mxu0 0.0
        %635 = vmatpush1.msra.mxu0 %v566
        %636 = vmatprep.subr.mxu0 0.0
        %637 = vmatpush1.msra.mxu0 %v567
        %638 = vmatprep.subr.mxu0 0.0
        %639 = vmatpush1.msra.mxu0 %v568
        %640 = vmatprep.subr.mxu0 0.0
        %641 = vmatpush1.msra.mxu0 %v569
        %642 = vmatprep.subr.mxu0 0.0
        %643 = vmatpush1.msra.mxu0 %v570
        %644 = vmatprep.subr.mxu0 0.0
        %645 = vmatpush1.msra.mxu0 %v571
        %646 = vmatprep.subr.mxu0 0.0
        %647 = vmatpush1.msra.mxu0 %v572
        %648 = vmatprep.subr.mxu0 0.0
        %649 = vmatpush1.msra.mxu0 %v573
        %650 = vmatprep.subr.mxu0 0.0
        %651 = vmatpush1.msra.mxu0 %v574
        %652 = vmatprep.subr.mxu0 0.0
        %653 = vmatpush1.msra.mxu0 %v575
        %654 = vmatprep.subr.mxu0 0.0
        %655 = vmatpush1.msra.mxu0 %v576
        %656 = vmatprep.subr.mxu0 0.0
        %657 = vmatpush1.msra.mxu0 %v577
        %658 = vmatprep.subr.mxu0 0.0
        %659 = vmatpush1.msra.mxu0 %v578
        %660 = vmatprep.subr.mxu0 0.0
        %661 = vmatpush1.msra.mxu0 %v579
        %662 = vmatprep.subr.mxu0 0.0
        %663 = vmatpush1.msra.mxu0 %v580
        %664 = vmatprep.subr.mxu0 0.0
        %665 = vmatpush1.msra.mxu0 %v581
        %666 = vmatprep.subr.mxu0 0.0
        %667 = vmatpush1.msra.mxu0 %v582
        %668 = vmatprep.subr.mxu0 0.0
        %669 = vmatpush1.msra.mxu0 %v583
        %670 = vmatprep.subr.mxu0 0.0
        %671 = vmatpush1.msra.mxu0 %v584
        %672 = vmatprep.subr.mxu0 0.0
        %673 = vmatpush1.msra.mxu0 %v585
        %674 = vmatprep.subr.mxu0 0.0
        %675 = vmatpush1.msra.mxu0 %v586
        %676 = vmatprep.subr.mxu0 0.0
        %677 = vmatpush1.msra.mxu0 %v587
        %678 = vmatprep.subr.mxu0 0.0
        %679 = vmatpush1.msra.mxu0 %v588
        %680 = vmatprep.subr.mxu0 0.0
        %681 = vmatpush1.msra.mxu0 %v589
        %682 = vmatprep.subr.mxu0 0.0
        %683 = vmatpush1.msra.mxu0 %v590
        %684 = vmatprep.subr.mxu0 0.0
        %685 = vmatpush1.msra.mxu0 %v591
        %686 = vmatprep.subr.mxu0 0.0
        %687 = vmatpush1.msra.mxu0 %v592
        %688 = vmatprep.subr.mxu0 0.0
        %689 = vmatpush1.msra.mxu0 %v593
        %690 = vmatprep.mubr.f32.mxu0 %v354
        %691 = vmatmul.mubr.f32.gmra.mrb[0].mxu0 %v258
        %v692 = vpop.f32.mrb[0].mxu0
        %v693 = vadd.f32 0.0, %v692
        %v694 = vpop.f32.mrb[0].mxu0
        %695 = vmatprep.mubr.f32.mxu0 %v355
        %696 = vmatmul.mubr.f32.gmra.mrb[0].mxu0 %v259
        %v697 = vpop.f32.mrb[0].mxu0
        %v698 = vadd.f32 0.0, %v697
        %v699 = vpop.f32.mrb[0].mxu0
        %700 = vmatprep.mubr.f32.mxu0 %v356
        %701 = vmatmul.mubr.f32.gmra.mrb[0].mxu0 %v260
        %v702 = vpop.f32.mrb[0].mxu0
        %v703 = vadd.f32 0.0, %v702
        %v704 = vpop.f32.mrb[0].mxu0
        %705 = vmatprep.mubr.f32.mxu0 %v357
        %706 = vmatmul.mubr.f32.gmra.mrb[0].mxu0 %v261
        %v707 = vpop.f32.mrb[0].mxu0
        %v708 = vadd.f32 0.0, %v707
        %v709 = vpop.f32.mrb[0].mxu0
        %710 = vmatprep.mubr.f32.mxu0 %v358
        %711 = vmatmul.mubr.f32.gmra.mrb[0].mxu0 %v262
        %v712 = vpop.f32.mrb[0].mxu0
        %v713 = vadd.f32 0.0, %v712
        %v714 = vpop.f32.mrb[0].mxu0
        %715 = vmatprep.mubr.f32.mxu0 %v359
        %716 = vmatmul.mubr.f32.gmra.mrb[0].mxu0 %v263
        %v717 = vpop.f32.mrb[0].mxu0
        %v718 = vadd.f32 0.0, %v717
        %v719 = vpop.f32.mrb[0].mxu0
        %720 = vmatprep.mubr.f32.mxu0 %v360
        %721 = vmatmul.mubr.f32.gmra.mrb[0].mxu0 %v264
        %v722 = vpop.f32.mrb[0].mxu0
        %v723 = vadd.f32 0.0, %v722
        %v724 = vpop.f32.mrb[0].mxu0
        %725 = vmatprep.mubr.f32.mxu0 %v361
        %726 = vmatmul.mubr.f32.gmra.mrb[0].mxu0 %v265
        %v727 = vpop.f32.mrb[0].mxu0
        %v728 = vadd.f32 0.0, %v727
        %v729 = vpop.f32.mrb[0].mxu0
        %730 = vmatprep.mubr.f32.mxu0 %v362
        %731 = vmatmul.mubr.f32.gmra.mrb[0].mxu0 %v266
        %v732 = vpop.f32.mrb[0].mxu0
        %v733 = vadd.f32 0.0, %v732
        %v734 = vpop.f32.mrb[0].mxu0
        %735 = vmatprep.mubr.f32.mxu0 %v363
        %736 = vmatmul.mubr.f32.gmra.mrb[0].mxu0 %v267
        %v737 = vpop.f32.mrb[0].mxu0
        %v738 = vadd.f32 0.0, %v737
        %v739 = vpop.f32.mrb[0].mxu0
        %740 = vmatprep.mubr.f32.mxu0 %v364
        %741 = vmatmul.mubr.f32.gmra.mrb[0].mxu0 %v268
        %v742 = vpop.f32.mrb[0].mxu0
        %v743 = vadd.f32 0.0, %v742
        %v744 = vpop.f32.mrb[0].mxu0
        %745 = vmatprep.mubr.f32.mxu0 %v365
        %746 = vmatmul.mubr.f32.gmra.mrb[0].mxu0 %v269
        %v747 = vpop.f32.mrb[0].mxu0
        %v748 = vadd.f32 0.0, %v747
        %v749 = vpop.f32.mrb[0].mxu0
        %750 = vmatprep.mubr.f32.mxu0 %v366
        %751 = vmatmul.mubr.f32.gmra.mrb[0].mxu0 %v270
        %v752 = vpop.f32.mrb[0].mxu0
        %v753 = vadd.f32 0.0, %v752
        %v754 = vpop.f32.mrb[0].mxu0
        %755 = vmatprep.mubr.f32.mxu0 %v367
        %756 = vmatmul.mubr.f32.gmra.mrb[0].mxu0 %v271
        %v757 = vpop.f32.mrb[0].mxu0
        %v758 = vadd.f32 0.0, %v757
        %v759 = vpop.f32.mrb[0].mxu0
        %760 = vmatprep.mubr.f32.mxu0 %v368
        %761 = vmatmul.mubr.f32.gmra.mrb[0].mxu0 %v272
        %v762 = vpop.f32.mrb[0].mxu0
        %v763 = vadd.f32 0.0, %v762
        %v764 = vpop.f32.mrb[0].mxu0
        %765 = vmatprep.mubr.f32.mxu0 %v369
        %766 = vmatmul.mubr.f32.gmra.mrb[0].mxu0 %v273
        %v767 = vpop.f32.mrb[0].mxu0
        %v768 = vadd.f32 0.0, %v767
        %v769 = vpop.f32.mrb[0].mxu0
        %770 = vdwg.mxu0
        %771 = vmatprep.subr.mxu0 0.0
        %772 = vmatpush1.msra.mxu0 %v594
        %773 = vmatprep.subr.mxu0 0.0
        %774 = vmatpush1.msra.mxu0 %v595
        %775 = vmatprep.subr.mxu0 0.0
        %776 = vmatpush1.msra.mxu0 %v596
        %777 = vmatprep.subr.mxu0 0.0
        %778 = vmatpush1.msra.mxu0 %v597
        %779 = vmatprep.subr.mxu0 0.0
        %780 = vmatpush1.msra.mxu0 %v598
        %781 = vmatprep.subr.mxu0 0.0
        %782 = vmatpush1.msra.mxu0 %v599
        %783 = vmatprep.subr.mxu0 0.0
        %784 = vmatpush1.msra.mxu0 %v600
        %785 = vmatprep.subr.mxu0 0.0
        %786 = vmatpush1.msra.mxu0 %v601
        %787 = vmatprep.subr.mxu0 0.0
        %788 = vmatpush1.msra.mxu0 %v602
        %789 = vmatprep.subr.mxu0 0.0
        %790 = vmatpush1.msra.mxu0 %v603
        %791 = vmatprep.subr.mxu0 0.0
        %792 = vmatpush1.msra.mxu0 %v604
        %793 = vmatprep.subr.mxu0 0.0
        %794 = vmatpush1.msra.mxu0 %v605
        %795 = vmatprep.subr.mxu0 0.0
        %796 = vmatpush1.msra.mxu0 %v606
        %797 = vmatprep.subr.mxu0 0.0
        %798 = vmatpush1.msra.mxu0 %v607
        %799 = vmatprep.subr.mxu0 0.0
        %800 = vmatpush1.msra.mxu0 %v608
        %801 = vmatprep.subr.mxu0 0.0
        %802 = vmatpush1.msra.mxu0 %v609
        %803 = vmatprep.subr.mxu0 0.0
        %804 = vmatpush1.msra.mxu0 %v610
        %805 = vmatprep.subr.mxu0 0.0
        %806 = vmatpush1.msra.mxu0 %v611
        %807 = vmatprep.subr.mxu0 0.0
        %808 = vmatpush1.msra.mxu0 %v612
        %809 = vmatprep.subr.mxu0 0.0
        %810 = vmatpush1.msra.mxu0 %v613
        %811 = vmatprep.subr.mxu0 0.0
        %812 = vmatpush1.msra.mxu0 %v614
        %813 = vmatprep.subr.mxu0 0.0
        %814 = vmatpush1.msra.mxu0 %v615
        %815 = vmatprep.subr.mxu0 0.0
        %816 = vmatpush1.msra.mxu0 %v616
        %817 = vmatprep.subr.mxu0 0.0
        %818 = vmatpush1.msra.mxu0 %v617
        %819 = vmatprep.subr.mxu0 0.0
        %820 = vmatpush1.msra.mxu0 %v618
        %821 = vmatprep.subr.mxu0 0.0
        %822 = vmatpush1.msra.mxu0 %v619
        %823 = vmatprep.subr.mxu0 0.0
        %824 = vmatpush1.msra.mxu0 %v620
        %825 = vmatprep.subr.mxu0 0.0
        %826 = vmatpush1.msra.mxu0 %v621
        %827 = vmatprep.subr.mxu0 0.0
        %828 = vmatpush1.msra.mxu0 %v622
        %829 = vmatprep.subr.mxu0 0.0
        %830 = vmatpush1.msra.mxu0 %v623
        %831 = vmatprep.subr.mxu0 0.0
        %832 = vmatpush1.msra.mxu0 %v624
        %833 = vmatprep.subr.mxu0 0.0
        %834 = vmatpush1.msra.mxu0 %v625
        %835 = vmatprep.mubr.f32.mxu0 %v546
        %836 = vmatmul.mubr.f32.gmra.mrb[0].mxu0 %v450
        %v837 = vpop.f32.mrb[0].mxu0
        %v838 = vadd.f32 %v693, %v837
        %v839 = vpop.f32.mrb[0].mxu0
        %840 = vmatprep.mubr.f32.mxu0 %v547
        %841 = vmatmul.mubr.f32.gmra.mrb[0].mxu0 %v451
        %v842 = vpop.f32.mrb[0].mxu0
        %v843 = vadd.f32 %v698, %v842
        %v844 = vpop.f32.mrb[0].mxu0
        %845 = vmatprep.mubr.f32.mxu0 %v548
        %846 = vmatmul.mubr.f32.gmra.mrb[0].mxu0 %v452
        %v847 = vpop.f32.mrb[0].mxu0
        %v848 = vadd.f32 %v703, %v847
        %v849 = vpop.f32.mrb[0].mxu0
        %850 = vmatprep.mubr.f32.mxu0 %v549
        %851 = vmatmul.mubr.f32.gmra.mrb[0].mxu0 %v453
        %v852 = vpop.f32.mrb[0].mxu0
        %v853 = vadd.f32 %v708, %v852
        %v854 = vpop.f32.mrb[0].mxu0
        %855 = vmatprep.mubr.f32.mxu0 %v550
        %856 = vmatmul.mubr.f32.gmra.mrb[0].mxu0 %v454
        %v857 = vpop.f32.mrb[0].mxu0
        %v858 = vadd.f32 %v713, %v857
        %v859 = vpop.f32.mrb[0].mxu0
        %860 = vmatprep.mubr.f32.mxu0 %v551
        %861 = vmatmul.mubr.f32.gmra.mrb[0].mxu0 %v455
        %v862 = vpop.f32.mrb[0].mxu0
        %v863 = vadd.f32 %v718, %v862
        %v864 = vpop.f32.mrb[0].mxu0
        %865 = vmatprep.mubr.f32.mxu0 %v552
        %866 = vmatmul.mubr.f32.gmra.mrb[0].mxu0 %v456
        %v867 = vpop.f32.mrb[0].mxu0
        %v868 = vadd.f32 %v723, %v867
        %v869 = vpop.f32.mrb[0].mxu0
        %870 = vmatprep.mubr.f32.mxu0 %v553
        %871 = vmatmul.mubr.f32.gmra.mrb[0].mxu0 %v457
        %v872 = vpop.f32.mrb[0].mxu0
        %v873 = vadd.f32 %v728, %v872
        %v874 = vpop.f32.mrb[0].mxu0
        %875 = vmatprep.mubr.f32.mxu0 %v554
        %876 = vmatmul.mubr.f32.gmra.mrb[0].mxu0 %v458
        %v877 = vpop.f32.mrb[0].mxu0
        %v878 = vadd.f32 %v733, %v877
        %v879 = vpop.f32.mrb[0].mxu0
        %880 = vmatprep.mubr.f32.mxu0 %v555
        %881 = vmatmul.mubr.f32.gmra.mrb[0].mxu0 %v459
        %v882 = vpop.f32.mrb[0].mxu0
        %v883 = vadd.f32 %v738, %v882
        %v884 = vpop.f32.mrb[0].mxu0
        %885 = vmatprep.mubr.f32.mxu0 %v556
        %886 = vmatmul.mubr.f32.gmra.mrb[0].mxu0 %v460
        %v887 = vpop.f32.mrb[0].mxu0
        %v888 = vadd.f32 %v743, %v887
        %v889 = vpop.f32.mrb[0].mxu0
        %890 = vmatprep.mubr.f32.mxu0 %v557
        %891 = vmatmul.mubr.f32.gmra.mrb[0].mxu0 %v461
        %v892 = vpop.f32.mrb[0].mxu0
        %v893 = vadd.f32 %v748, %v892
        %v894 = vpop.f32.mrb[0].mxu0
        %895 = vmatprep.mubr.f32.mxu0 %v558
        %896 = vmatmul.mubr.f32.gmra.mrb[0].mxu0 %v462
        %v897 = vpop.f32.mrb[0].mxu0
        %v898 = vadd.f32 %v753, %v897
        %v899 = vpop.f32.mrb[0].mxu0
        %900 = vmatprep.mubr.f32.mxu0 %v559
        %901 = vmatmul.mubr.f32.gmra.mrb[0].mxu0 %v463
        %v902 = vpop.f32.mrb[0].mxu0
        %v903 = vadd.f32 %v758, %v902
        %v904 = vpop.f32.mrb[0].mxu0
        %905 = vmatprep.mubr.f32.mxu0 %v560
        %906 = vmatmul.mubr.f32.gmra.mrb[0].mxu0 %v464
        %v907 = vpop.f32.mrb[0].mxu0
        %v908 = vadd.f32 %v763, %v907
        %v909 = vpop.f32.mrb[0].mxu0
        %910 = vmatprep.mubr.f32.mxu0 %v561
        %911 = vmatmul.mubr.f32.gmra.mrb[0].mxu0 %v465
        %v912 = vpop.f32.mrb[0].mxu0
        %v913 = vadd.f32 %v768, %v912
        %v914 = vpop.f32.mrb[0].mxu0
        %915 = vdwg.mxu0
        %916 = vst [vmem:[%s152] sm:$0xff] %v838
        %917 = vst [vmem:[%s152 + $0x8] sm:$0xff] %v843
        %918 = vst [vmem:[%s152 + $0x10] sm:$0xff] %v848
        %919 = vst [vmem:[%s152 + $0x18] sm:$0xff] %v853
        %920 = vst [vmem:[%s152 + $0x20] sm:$0xff] %v858
        %921 = vst [vmem:[%s152 + $0x28] sm:$0xff] %v863
        %922 = vst [vmem:[%s152 + $0x30] sm:$0xff] %v868
        %923 = vst [vmem:[%s152 + $0x38] sm:$0xff] %v873
        %924 = vst [vmem:[%s152 + $0x40] sm:$0xff] %v878
        %925 = vst [vmem:[%s152 + $0x48] sm:$0xff] %v883
        %926 = vst [vmem:[%s152 + $0x50] sm:$0xff] %v888
        %927 = vst [vmem:[%s152 + $0x58] sm:$0xff] %v893
        %928 = vst [vmem:[%s152 + $0x60] sm:$0xff] %v898
        %929 = vst [vmem:[%s152 + $0x68] sm:$0xff] %v903
        %930 = vst [vmem:[%s152 + $0x70] sm:$0xff] %v908
        %931 = vst [vmem:[%s152 + $0x78] sm:$0xff] %v913
        %s932 = sand.u32 %s72, 1
        %s933 = scalar_lea.sflag [#allocation4], %s932
        %s934 = sand.u32 %s72, 1
        %s935 = smul.addr %s934, 128
        %s936 = scalar_lea.vmem [#allocation5], %s935
        // Predicated region
        $region33: #{tpu_custom_call.1} parent=27 // pred_check
          %p937 = pneg %p82
        $region34: #{tpu_custom_call.1} parent=27 // pred_check_branch
          %939 = sbr.rel (%p937) target = $region36
        $region35: #{tpu_custom_call.1} parent=27 // pred_region
          %s940 = smul.u32 16, %s17
          %s942 = ssub.s32 2048, 2048
          %943 = vsyncadd %s933, %s942
          %s944 = smul.addr %s940, 128
          %s945 = scalar_lea.hbm %s2, %s944
          %s946 = sshll.u32 %s936, 4
          %s947 = int_to_ptr.vmem [resolvable:$true] %s946
          %952 = dma.vmem_to_hbm [thread:$0]  %s947, 2048, %s945, %s933, 128, 128, 8
        $region36: #{tpu_custom_call.1} parent=27 // pred_fallthru
          _
      $region28: #{tpu_custom_call.1} parent=5 // pred_fallthru
        _
      %p953 = scmp.le.s32.totalorder 2, %s12
      // Predicated region
      $region37: #{tpu_custom_call.1} parent=5 // pred_check
        %p954 = pneg %p953
      $region38: #{tpu_custom_call.1} parent=5 // pred_check_branch
        %956 = sbr.rel (%p954) target = $region40
      $region39: #{tpu_custom_call.1} parent=5 // pred_region
        %s957 = ssub.s32 %s12, 2
        // Predicated region
        $region41: #{tpu_custom_call.1} parent=39 // pred_check
          %p958 = pneg %p88
        $region42: #{tpu_custom_call.1} parent=39 // pred_check_branch
          %960 = sbr.rel (%p958) target = $region44
        $region43: #{tpu_custom_call.1} parent=39 // pred_region
          %s961 = sand.u32 %s73, 1
          %s962 = scalar_lea.sflag [#allocation4], %s961
          %s963 = sand.u32 %s73, 1
          %s964 = smul.addr %s963, 128
          %s965 = scalar_lea.vmem [#allocation5], %s964
          %966 = dma.done %s962, 2048
        $region44: #{tpu_custom_call.1} parent=39 // pred_fallthru
          _
      $region40: #{tpu_custom_call.1} parent=5 // pred_fallthru
        _
    $region6: #{tpu_custom_call.1} parent=1 // loop_footer
      %s16 = sadd.s32 1, %s12
    $region7: #{tpu_custom_call.1} parent=1 // loop_footer_branch
      %11 = sbr.rel target = $region3
    $region8: #{tpu_custom_call.1} parent=1 // loop_exit
      _
    %967 = vsyncpa [#allocation3], 1
    %s968 = scalar_lea.sflag [#allocation3], 1
    %969 = vsyncpa %s968, 1
    %970 = vsyncpa [#allocation4], 1
    %s971 = scalar_lea.sflag [#allocation4], 1
    %972 = vsyncpa %s971, 1

</llo_original>
